<compile_context>
chip_gen: v7x
topology: tpu7x:2x2x1
jax: 0.10.0
libtpu: 0.0.40
codegen_flags: <defaults>
</compile_context>

<pallas_src>
import functools

import jax
import jax.numpy as jnp
import numpy as np
from jax.experimental import pallas as pl
from jax.experimental.pallas import tpu as pltpu


def _round_up(n, m):
    return ((n + m - 1) // m) * m


def _layer_kernel(dilation, cdp, csp, c_skip, has_skip, *refs):
    """One batch element, channel-major (C, T) layout.

    refs (has_skip=True):  x, skip_in, w0, w1, bfg, wsr, bsr, res_out, skip_out
    refs (has_skip=False): x,          w0, w1, bfg, wsr, bsr, res_out, skip_out
    """
    if has_skip:
        (x_ref, skip_ref, w0_ref, w1_ref, bfg_ref, wsr_ref, bsr_ref,
         res_out_ref, skip_out_ref) = refs
    else:
        (x_ref, w0_ref, w1_ref, bfg_ref, wsr_ref, bsr_ref,
         res_out_ref, skip_out_ref) = refs

    t_out = res_out_ref.shape[-1]

    x = x_ref[...]                       # (c_res, T), T on lanes
    x0 = x[:, :t_out]                    # x[t]       (aligned start)
    # x[t + dilation]; in (C,T) layout this is a lane-axis shift -> XLU rotate.
    x1 = x[:, dilation:]

    # Fused filter+gate dilated conv (kernel=2): two matmuls, f32 accumulation.
    z = (jnp.dot(w0_ref[...], x0, preferred_element_type=jnp.float32)
         + jnp.dot(w1_ref[...], x1, preferred_element_type=jnp.float32)
         + bfg_ref[...])                 # (2*cdp, t_out)

    # rows [0:cdp] = filter (padded rows -> tanh(0)=0), rows [cdp:] = gate.
    out = jnp.tanh(z[:cdp]) * jax.nn.sigmoid(z[cdp:])   # (cdp, t_out), f32

    # Fused 1x1 convs: rows [0:c_skip] = skip squash, rows [csp:] = residual squash.
    sr = (jnp.dot(wsr_ref[...], out.astype(wsr_ref.dtype),
                  preferred_element_type=jnp.float32)
          + bsr_ref[...])                # (csp + c_res, t_out)

    res = sr[csp:] + x1.astype(jnp.float32)
    res_out_ref[...] = res.astype(res_out_ref.dtype)

    skip = sr[:c_skip]
    if has_skip:
        skip = skip + skip_ref[...][:, dilation:].astype(jnp.float32)
    skip_out_ref[...] = skip.astype(skip_out_ref.dtype)


def layer_forward(x, skip_in, params, dilation, *, compute_dtype=None):
    """x: (B, c_res, T); skip_in: (B, c_skip, T) or None.

    Returns (residual_out, skip_out), each (B, C, T - dilation), matching the
    PyTorch Layer.forward semantics exactly.  No layout transposes are needed:
    the kernel works directly in the NCT (channel-major) layout.
    """
    B, c_res, T = x.shape
    t_out = T - dilation
    c_skip = params["c_skip"]
    cdp = params["cdp"]
    csp = params["csp"]
    out_dtype = x.dtype

    w0, w1, bfg, wsr, bsr = (params[k] for k in ("w0", "w1", "bfg", "wsr", "bsr"))

    if compute_dtype is not None:
        # Halve HBM traffic on the dominant streams; accumulation stays f32.
        x = x.astype(compute_dtype)
        w0 = w0.astype(compute_dtype)
        w1 = w1.astype(compute_dtype)
        wsr = wsr.astype(compute_dtype)
        if skip_in is not None:
            skip_in = skip_in.astype(compute_dtype)

    has_skip = skip_in is not None
    kernel = functools.partial(_layer_kernel, dilation, cdp, csp, c_skip, has_skip)

    in_specs = [pl.BlockSpec((None, c_res, T), lambda b: (b, 0, 0))]
    inputs = [x]
    if has_skip:
        in_specs.append(pl.BlockSpec((None, c_skip, T), lambda b: (b, 0, 0)))
        inputs.append(skip_in)
    # Weights/biases: full 2-D blocks, constant index_map -> stay resident in VMEM.
    for w in (w0, w1, bfg, wsr, bsr):
        in_specs.append(pl.BlockSpec(w.shape, lambda b: (0, 0)))
        inputs.append(w)

    res_out, skip_out = pl.pallas_call(
        kernel,
        out_shape=(
            jax.ShapeDtypeStruct((B, c_res, t_out), out_dtype),
            jax.ShapeDtypeStruct((B, c_skip, t_out), out_dtype),
        ),
        grid_spec=pltpu.PrefetchScalarGridSpec(
            num_scalar_prefetch=0,
            grid=(B,),
            in_specs=in_specs,
            out_specs=[
                pl.BlockSpec((None, c_res, t_out), lambda b: (b, 0, 0)),
                pl.BlockSpec((None, c_skip, t_out), lambda b: (b, 0, 0)),
            ],
        ),
        compiler_params=pltpu.CompilerParams(
            dimension_semantics=("parallel",)),
    )(*inputs)

    return res_out, skip_out


def init_raw_params(key, residual_channels, skip_channels, dilation_channels):
    """Deterministic synthetic parameters in PyTorch Conv1d layout (O, I, K)."""
    ks = jax.random.split(key, 8)

    def w(k, shape):
        return jax.random.normal(k, shape, dtype=jnp.float32) * 0.1

    wf = w(ks[0], (dilation_channels, residual_channels, 2))
    bf = w(ks[1], (dilation_channels,))
    wg = w(ks[2], (dilation_channels, residual_channels, 2))
    bg = w(ks[3], (dilation_channels,))
    wsq = w(ks[4], (skip_channels, dilation_channels, 1))
    bsq = w(ks[5], (skip_channels,))
    wrq = w(ks[6], (residual_channels, dilation_channels, 1))
    brq = w(ks[7], (residual_channels,))
    return (wf, bf, wg, bg, wsq, bsq, wrq, brq)


def pack_params(raw, residual_channels, skip_channels, dilation_channels):
    """Pack raw Conv1d weights into the fused, 8-row-aligned kernel layout."""
    wf, bf, wg, bg, wsq, bsq, wrq, brq = raw
    c_res, c_skip, c_dil = residual_channels, skip_channels, dilation_channels
    cdp = _round_up(c_dil, 8)    # padded dilation-channel block
    csp = _round_up(c_skip, 8)   # padded skip-channel block

    def pad_rows(a, rows):
        return jnp.pad(a, ((0, rows - a.shape[0]),) + ((0, 0),) * (a.ndim - 1))

    def pad_cols(a, cols):
        return jnp.pad(a, ((0, 0), (0, cols - a.shape[1])))

    # Dilated conv taps, fused [filter ; gate] along the output-row dim.
    w0 = jnp.concatenate([pad_rows(wf[:, :, 0], cdp),
                          pad_rows(wg[:, :, 0], cdp)], axis=0)      # (2*cdp, c_res)
    w1 = jnp.concatenate([pad_rows(wf[:, :, 1], cdp),
                          pad_rows(wg[:, :, 1], cdp)], axis=0)      # (2*cdp, c_res)
    bfg = jnp.concatenate([pad_rows(bf[:, None], cdp),
                           pad_rows(bg[:, None], cdp)], axis=0)     # (2*cdp, 1)

    # Fused 1x1 convs: rows [skip ; residual], columns padded to cdp.
    ws = pad_cols(wsq[:, :, 0], cdp)                                # (c_skip, cdp)
    wr = pad_cols(wrq[:, :, 0], cdp)                                # (c_res, cdp)
    wsr = jnp.concatenate([pad_rows(ws, csp), wr], axis=0)          # (csp + c_res, cdp)
    bsr = jnp.concatenate([pad_rows(bsq[:, None], csp),
                           brq[:, None]], axis=0)                   # (csp + c_res, 1)

    return dict(w0=w0, w1=w1, bfg=bfg, wsr=wsr, bsr=bsr,
                c_res=c_res, c_skip=c_skip, c_dil=c_dil, cdp=cdp, csp=csp)


def _reference(x, skip_in, raw, dilation):
    """Pure-JAX reference using lax conv (mirrors the PyTorch forward)."""
    wf, bf, wg, bg, wsq, bsq, wrq, brq = raw
    dn = ('NCH', 'OIH', 'NCH')
    conv = lambda inp, wt, d: jax.lax.conv_general_dilated(
        inp, wt, window_strides=(1,), padding='VALID',
        rhs_dilation=(d,), dimension_numbers=dn)
    filt = conv(x, wf, dilation) + bf[None, :, None]
    gate = conv(x, wg, dilation) + bg[None, :, None]
    out = jnp.tanh(filt) * jax.nn.sigmoid(gate)
    skip_out = conv(out, wsq, 1) + bsq[None, :, None]
    if skip_in is not None:
        skip_out = skip_out + skip_in[:, :, dilation:]
    res_out = conv(out, wrq, 1) + brq[None, :, None] + x[:, :, dilation:]
    return res_out, skip_out


if __name__ == "__main__":
    B = 2
    residual_channels = 8
    skip_channels = 16
    dilation_channels = 12
    dilation = 2
    T = 16

    key = jax.random.PRNGKey(0)
    k_x, k_s, k_p = jax.random.split(key, 3)
    x = jax.random.normal(k_x, (B, residual_channels, T), dtype=jnp.float32)
    skip_in = jax.random.normal(k_s, (B, skip_channels, T), dtype=jnp.float32)

    raw = init_raw_params(k_p, residual_channels, skip_channels, dilation_channels)
    params = pack_params(raw, residual_channels, skip_channels, dilation_channels)

    # f32 path with skip accumulation
    res_out, skip_out = layer_forward(x, skip_in, params, dilation)
    jax.block_until_ready((res_out, skip_out))
    res_ref, skip_ref = _reference(x, skip_in, raw, dilation)
    np.testing.assert_allclose(np.asarray(res_out), np.asarray(res_ref), rtol=1e-5, atol=1e-5)
    np.testing.assert_allclose(np.asarray(skip_out), np.asarray(skip_ref), rtol=1e-5, atol=1e-5)

    # skip_in is None path (no zeros tensor materialized / DMA'd)
    res_out0, skip_out0 = layer_forward(x, None, params, dilation)
    jax.block_until_ready((res_out0, skip_out0))
    res_ref0, skip_ref0 = _reference(x, None, raw, dilation)
    np.testing.assert_allclose(np.asarray(res_out0), np.asarray(res_ref0), rtol=1e-5, atol=1e-5)
    np.testing.assert_allclose(np.asarray(skip_out0), np.asarray(skip_ref0), rtol=1e-5, atol=1e-5)

    # bf16 streaming path (f32 accumulation) — loose tolerance
    res_bf, skip_bf = layer_forward(x, skip_in, params, dilation,
                                    compute_dtype=jnp.bfloat16)
    jax.block_until_ready((res_bf, skip_bf))
    np.testing.assert_allclose(np.asarray(res_bf), np.asarray(res_ref), rtol=5e-2, atol=5e-2)
    np.testing.assert_allclose(np.asarray(skip_bf), np.asarray(skip_ref), rtol=5e-2, atol=5e-2)

    print("KERNEL_OK")
</pallas_src>

<mosaic_0001>
module attributes {stable_mosaic.version = 11 : i64} {
  func.func @_layer_kernel(%arg0: i32, %arg1: memref<1x8x16xf32, #tpu.memory_space<vmem>>, %arg2: memref<1x16x16xf32, #tpu.memory_space<vmem>>, %arg3: memref<32x8xf32, #tpu.memory_space<vmem>>, %arg4: memref<32x8xf32, #tpu.memory_space<vmem>>, %arg5: memref<32x1xf32, #tpu.memory_space<vmem>>, %arg6: memref<24x16xf32, #tpu.memory_space<vmem>>, %arg7: memref<24x1xf32, #tpu.memory_space<vmem>>, %arg8: memref<1x8x14xf32, #tpu.memory_space<vmem>>, %arg9: memref<1x16x14xf32, #tpu.memory_space<vmem>>) attributes {dimension_semantics = [#tpu.dimension_semantics<parallel>], iteration_bounds = array<i64: 2>, scalar_prefetch = 0 : i64, scratch_operands = 0 : i64, tpu.core_type = #tpu.core_type<tc>, window_params = [{transform_indices = @transform_0, window_bounds = array<i64: 1, 8, 16>}, {transform_indices = @transform_1, window_bounds = array<i64: 1, 16, 16>}, {pipeline_mode = #tpu.pipeline_mode<synchronous>, transform_indices = @transform_2, window_bounds = array<i64: 32, 8>}, {pipeline_mode = #tpu.pipeline_mode<synchronous>, transform_indices = @transform_3, window_bounds = array<i64: 32, 8>}, {pipeline_mode = #tpu.pipeline_mode<synchronous>, transform_indices = @transform_4, window_bounds = array<i64: 32, 1>}, {pipeline_mode = #tpu.pipeline_mode<synchronous>, transform_indices = @transform_5, window_bounds = array<i64: 24, 16>}, {pipeline_mode = #tpu.pipeline_mode<synchronous>, transform_indices = @transform_6, window_bounds = array<i64: 24, 1>}, {transform_indices = @transform_7, window_bounds = array<i64: 1, 8, 14>}, {transform_indices = @transform_8, window_bounds = array<i64: 1, 16, 14>}]} {
    %c0 = arith.constant 0 : index
    %c0_0 = arith.constant 0 : index
    %c0_1 = arith.constant 0 : index
    %0 = vector.load %arg1[%c0, %c0_0, %c0_1] : memref<1x8x16xf32, #tpu.memory_space<vmem>>, vector<1x8x16xf32>
    %1 = vector.shape_cast %0 : vector<1x8x16xf32> to vector<8x16xf32>
    %2 = vector.extract_strided_slice %1 {offsets = [0, 0], sizes = [8, 14], strides = [1, 1]} : vector<8x16xf32> to vector<8x14xf32>
    %3 = vector.extract_strided_slice %1 {offsets = [0, 2], sizes = [8, 14], strides = [1, 1]} : vector<8x16xf32> to vector<8x14xf32>
    %c0_2 = arith.constant 0 : index
    %c0_3 = arith.constant 0 : index
    %4 = vector.load %arg3[%c0_2, %c0_3] : memref<32x8xf32, #tpu.memory_space<vmem>>, vector<32x8xf32>
    %cst = arith.constant dense<0.000000e+00> : vector<32x14xf32>
    %5 = tpu.matmul %4, %2, %cst {dimension_numbers = #tpu.dot_dimension_numbers<[1], [0], [0], [1], [0, 0, 1, 1], [], []>} : vector<32x8xf32>, vector<8x14xf32>, vector<32x14xf32> -> vector<32x14xf32>
    %c0_4 = arith.constant 0 : index
    %c0_5 = arith.constant 0 : index
    %6 = vector.load %arg4[%c0_4, %c0_5] : memref<32x8xf32, #tpu.memory_space<vmem>>, vector<32x8xf32>
    %cst_6 = arith.constant dense<0.000000e+00> : vector<32x14xf32>
    %7 = tpu.matmul %6, %3, %cst_6 {dimension_numbers = #tpu.dot_dimension_numbers<[1], [0], [0], [1], [0, 0, 1, 1], [], []>} : vector<32x8xf32>, vector<8x14xf32>, vector<32x14xf32> -> vector<32x14xf32>
    %8 = arith.addf %5, %7 : vector<32x14xf32>
    %c0_7 = arith.constant 0 : index
    %c0_8 = arith.constant 0 : index
    %9 = vector.load %arg5[%c0_7, %c0_8] : memref<32x1xf32, #tpu.memory_space<vmem>>, vector<32x1xf32>
    %10 = vector.broadcast %9 : vector<32x1xf32> to vector<32x14xf32>
    %11 = arith.addf %8, %10 : vector<32x14xf32>
    %12 = vector.extract_strided_slice %11 {offsets = [0, 0], sizes = [16, 14], strides = [1, 1]} : vector<32x14xf32> to vector<16x14xf32>
    %13 = math.tanh %12 : vector<16x14xf32>
    %14 = vector.extract_strided_slice %11 {offsets = [16, 0], sizes = [16, 14], strides = [1, 1]} : vector<32x14xf32> to vector<16x14xf32>
    %15 = arith.negf %14 : vector<16x14xf32>
    %16 = math.exp %15 : vector<16x14xf32>
    %cst_9 = arith.constant 1.000000e+00 : f32
    %17 = vector.broadcast %cst_9 : f32 to vector<16x14xf32>
    %18 = arith.addf %17, %16 : vector<16x14xf32>
    %19 = arith.divf %17, %18 : vector<16x14xf32>
    %20 = arith.mulf %13, %19 : vector<16x14xf32>
    %c0_10 = arith.constant 0 : index
    %c0_11 = arith.constant 0 : index
    %21 = vector.load %arg6[%c0_10, %c0_11] : memref<24x16xf32, #tpu.memory_space<vmem>>, vector<24x16xf32>
    %cst_12 = arith.constant dense<0.000000e+00> : vector<24x14xf32>
    %22 = tpu.matmul %21, %20, %cst_12 {dimension_numbers = #tpu.dot_dimension_numbers<[1], [0], [0], [1], [0, 0, 1, 1], [], []>} : vector<24x16xf32>, vector<16x14xf32>, vector<24x14xf32> -> vector<24x14xf32>
    %c0_13 = arith.constant 0 : index
    %c0_14 = arith.constant 0 : index
    %23 = vector.load %arg7[%c0_13, %c0_14] : memref<24x1xf32, #tpu.memory_space<vmem>>, vector<24x1xf32>
    %24 = vector.broadcast %23 : vector<24x1xf32> to vector<24x14xf32>
    %25 = arith.addf %22, %24 : vector<24x14xf32>
    %26 = vector.extract_strided_slice %25 {offsets = [16, 0], sizes = [8, 14], strides = [1, 1]} : vector<24x14xf32> to vector<8x14xf32>
    %27 = arith.addf %26, %3 : vector<8x14xf32>
    %c0_15 = arith.constant 0 : index
    %c0_16 = arith.constant 0 : index
    %c0_17 = arith.constant 0 : index
    %28 = vector.load %arg8[%c0_15, %c0_16, %c0_17] : memref<1x8x14xf32, #tpu.memory_space<vmem>>, vector<1x8x14xf32>
    %29 = vector.shape_cast %28 : vector<1x8x14xf32> to vector<8x14xf32>
    %30 = vector.shape_cast %27 : vector<8x14xf32> to vector<1x8x14xf32>
    tpu.vector_store %arg8[%c0_15, %c0_16, %c0_17], %30 {strides = array<i32>} : memref<1x8x14xf32, #tpu.memory_space<vmem>>, vector<1x8x14xf32>,
    %31 = vector.extract_strided_slice %25 {offsets = [0, 0], sizes = [16, 14], strides = [1, 1]} : vector<24x14xf32> to vector<16x14xf32>
    %c0_18 = arith.constant 0 : index
    %c0_19 = arith.constant 0 : index
    %c0_20 = arith.constant 0 : index
    %32 = vector.load %arg2[%c0_18, %c0_19, %c0_20] : memref<1x16x16xf32, #tpu.memory_space<vmem>>, vector<1x16x16xf32>
    %33 = vector.shape_cast %32 : vector<1x16x16xf32> to vector<16x16xf32>
    %34 = vector.extract_strided_slice %33 {offsets = [0, 2], sizes = [16, 14], strides = [1, 1]} : vector<16x16xf32> to vector<16x14xf32>
    %35 = arith.addf %31, %34 : vector<16x14xf32>
    %c0_21 = arith.constant 0 : index
    %c0_22 = arith.constant 0 : index
    %c0_23 = arith.constant 0 : index
    %36 = vector.load %arg9[%c0_21, %c0_22, %c0_23] : memref<1x16x14xf32, #tpu.memory_space<vmem>>, vector<1x16x14xf32>
    %37 = vector.shape_cast %36 : vector<1x16x14xf32> to vector<16x14xf32>
    %38 = vector.shape_cast %35 : vector<16x14xf32> to vector<1x16x14xf32>
    tpu.vector_store %arg9[%c0_21, %c0_22, %c0_23], %38 {strides = array<i32>} : memref<1x16x14xf32, #tpu.memory_space<vmem>>, vector<1x16x14xf32>,
    return
  }
  func.func @transform_0(%arg0: i32) -> (i32, i32, i32) {
    %c0_i32 = arith.constant 0 : i32
    %c0_i32_0 = arith.constant 0 : i32
    %c0_i32_1 = arith.constant 0 : i32
    return %arg0, %c0_i32, %c0_i32_0 : i32, i32, i32
  }
  func.func @transform_1(%arg0: i32) -> (i32, i32, i32) {
    %c0_i32 = arith.constant 0 : i32
    %c0_i32_0 = arith.constant 0 : i32
    %c0_i32_1 = arith.constant 0 : i32
    return %arg0, %c0_i32, %c0_i32_0 : i32, i32, i32
  }
  func.func @transform_2(%arg0: i32) -> (i32, i32) {
    %c0_i32 = arith.constant 0 : i32
    %c0_i32_0 = arith.constant 0 : i32
    %c0_i32_1 = arith.constant 0 : i32
    return %c0_i32, %c0_i32_0 : i32, i32
  }
  func.func @transform_3(%arg0: i32) -> (i32, i32) {
    %c0_i32 = arith.constant 0 : i32
    %c0_i32_0 = arith.constant 0 : i32
    %c0_i32_1 = arith.constant 0 : i32
    return %c0_i32, %c0_i32_0 : i32, i32
  }
  func.func @transform_4(%arg0: i32) -> (i32, i32) {
    %c0_i32 = arith.constant 0 : i32
    %c0_i32_0 = arith.constant 0 : i32
    %c0_i32_1 = arith.constant 0 : i32
    return %c0_i32, %c0_i32_0 : i32, i32
  }
  func.func @transform_5(%arg0: i32) -> (i32, i32) {
    %c0_i32 = arith.constant 0 : i32
    %c0_i32_0 = arith.constant 0 : i32
    %c0_i32_1 = arith.constant 0 : i32
    return %c0_i32, %c0_i32_0 : i32, i32
  }
  func.func @transform_6(%arg0: i32) -> (i32, i32) {
    %c0_i32 = arith.constant 0 : i32
    %c0_i32_0 = arith.constant 0 : i32
    %c0_i32_1 = arith.constant 0 : i32
    return %c0_i32, %c0_i32_0 : i32, i32
  }
  func.func @transform_7(%arg0: i32) -> (i32, i32, i32) {
    %c0_i32 = arith.constant 0 : i32
    %c0_i32_0 = arith.constant 0 : i32
    %c0_i32_1 = arith.constant 0 : i32
    return %arg0, %c0_i32, %c0_i32_0 : i32, i32, i32
  }
  func.func @transform_8(%arg0: i32) -> (i32, i32, i32) {
    %c0_i32 = arith.constant 0 : i32
    %c0_i32_0 = arith.constant 0 : i32
    %c0_i32_1 = arith.constant 0 : i32
    return %arg0, %c0_i32, %c0_i32_0 : i32, i32, i32
  }
}

</mosaic_0001>

<llo_original>
// kernel: tpu_custom_call.1
$region0: #{tpu_custom_call.1}
  #allocation0 [shape = 'u32[]', space=smem, size = 0x4, offset = 0x4, fixed_abs, tag = 'smem constant byte address 0x4 - core index']
  #allocation1 [shape = 'u32[144,128]{1,0:T(1,128)}', space=vmem, size = 0x12000, scoped, tag = 'internal scratch']
  %s0 = inlined_call_operand.vmem [shape: f32[2,8,16], index: 0, kind: input, shape index: {}]
  %s1 = inlined_call_operand.vmem [shape: f32[2,16,16], index: 1, kind: input, shape index: {}]
  %s2 = inlined_call_operand.vmem [shape: f32[32,8], index: 2, kind: input, shape index: {}]
  %s3 = inlined_call_operand.vmem [shape: f32[32,8], index: 3, kind: input, shape index: {}]
  %s4 = inlined_call_operand.vmem [shape: f32[32,1], index: 4, kind: input, shape index: {}]
  %s5 = inlined_call_operand.vmem [shape: f32[24,16], index: 5, kind: input, shape index: {}]
  %s6 = inlined_call_operand.vmem [shape: f32[24,1], index: 6, kind: input, shape index: {}]
  %s7 = inlined_call_operand.hbm [shape: f32[2,8,14], index: 7, kind: output, shape index: {0}]
  %s8 = inlined_call_operand.vmem [shape: f32[2,16,14], index: 8, kind: output, shape index: {1}]
  %9 = xla_tuple %s7, %s8
  %s10 = sld [smem:[#allocation0]]
  $region69: #{tpu_custom_call.1} parent=0
    _
  %s12 = ssub.s32 1, %s10
  %s13 = scalar_select 0, %s12, %s10
  $region1: #{tpu_custom_call.1} parent=0
    #allocation2 [shape = 'u8[8192]{0}', space=vmem, size = 0x2000, scoped, tag = 'output window, operand 0']
    #allocation3 [shape = 's32[2]{0}', space=sflag, size = 0x8, scoped, tag = 'scoped memory for tpu_custom_call.1']
    %14 = vsyncpa [#allocation3], 0
    %s15 = scalar_lea.sflag [#allocation3], 1
    %16 = vsyncpa %s15, 0
    loop: start=0, step=1, limit=4
    $region2: #{tpu_custom_call.1} parent=1 // loop_pre_header
      _
    $region3: #{tpu_custom_call.1} parent=1 // loop_header
      %s18 = sphi 0, %s22
      %p19 = scmp.ge.s32.totalorder %s18, 4
      %s28 = sphi 0, %s30
      %s31 = sphi 0, %s28
      %s32 = sphi 0, %s31
      %s48 = sphi 0, %s32
      %s54 = sphi 0, %s56
      %s57 = sphi 0, %s54
      %s58 = sphi 0, %s57
      %s74 = sphi 0, %s58
      %s78 = sphi 0, %s78
      %s80 = sphi 0, %s78
      %s81 = sphi 0, %s80
      %s95 = sphi 0, %s81
      %s99 = sphi 0, %s99
      %s101 = sphi 0, %s99
      %s102 = sphi 0, %s101
      %s116 = sphi 0, %s102
      %s120 = sphi 0, %s120
      %s122 = sphi 0, %s120
      %s123 = sphi 0, %s122
      %s137 = sphi 0, %s123
      %s141 = sphi 0, %s141
      %s143 = sphi 0, %s141
      %s144 = sphi 0, %s143
      %s158 = sphi 0, %s144
      %s162 = sphi 0, %s162
      %s164 = sphi 0, %s162
      %s165 = sphi 0, %s164
      %s179 = sphi 0, %s165
      %s185 = sphi 0, %s187
      %s188 = sphi 0, %s185
      %s189 = sphi 0, %s188
      %s205 = sphi 0, %s189
      %s211 = sphi 0, %s213
      %s214 = sphi 0, %s211
      %s215 = sphi 0, %s214
      %s231 = sphi 0, %s215
    $region4: #{tpu_custom_call.1} parent=1 // loop_header_branch
      %21 = sbr.rel (%p19) target = $region8
    $region5: #{tpu_custom_call.1} parent=1 // loop_body
      %s23 = ssub.s32 %s18, 1
      %s24 = ssub.s32 %s18, 2
      %s25 = sadd.s32 %s18, 1
      %s26 = ssub.s32 %s18, %s25
      %p27 = scmp.eq.s32.totalorder %s26, 0
      %s29 = sadd.s32 %s28, 1
      %s30 = scalar_select %p27, %s28, %s29
      %p33 = pneg %p27
      %p34 = scmp.eq.s32.totalorder %s18, 1
      %p35 = por %p33, %p34
      %p36 = scmp.ne.s32.totalorder %s28, %s31
      %p37 = scmp.eq.s32.totalorder %s18, 0
      %p38 = por %p36, %p37
      %p39 = scmp.ne.s32.totalorder %s28, %s31
      %p40 = scmp.eq.s32.totalorder %s23, 1
      %p41 = por %p39, %p40
      %p42 = scmp.ne.s32.totalorder %s31, %s32
      %p43 = scmp.eq.s32.totalorder %s23, 0
      %p44 = por %p42, %p43
      %p45 = scmp.ne.s32.totalorder %s31, %s32
      %p46 = scmp.eq.s32.totalorder %s24, 1
      %p47 = por %p45, %p46
      %p49 = scmp.ne.s32.totalorder %s32, %s48
      %p50 = scmp.eq.s32.totalorder %s24, 0
      %p51 = por %p49, %p50
      %s52 = ssub.s32 %s18, %s25
      %p53 = scmp.eq.s32.totalorder %s52, 0
      %s55 = sadd.s32 %s54, 1
      %s56 = scalar_select %p53, %s54, %s55
      %p59 = pneg %p53
      %p60 = scmp.eq.s32.totalorder %s18, 1
      %p61 = por %p59, %p60
      %p62 = scmp.ne.s32.totalorder %s54, %s57
      %p63 = scmp.eq.s32.totalorder %s18, 0
      %p64 = por %p62, %p63
      %p65 = scmp.ne.s32.totalorder %s54, %s57
      %p66 = scmp.eq.s32.totalorder %s23, 1
      %p67 = por %p65, %p66
      %p68 = scmp.ne.s32.totalorder %s57, %s58
      %p69 = scmp.eq.s32.totalorder %s23, 0
      %p70 = por %p68, %p69
      %p71 = scmp.ne.s32.totalorder %s57, %s58
      %p72 = scmp.eq.s32.totalorder %s24, 1
      %p73 = por %p71, %p72
      %p75 = scmp.ne.s32.totalorder %s58, %s74
      %p76 = scmp.eq.s32.totalorder %s24, 0
      %p77 = por %p75, %p76
      %s79 = sadd.s32 %s78, 1
      %p82 = scmp.eq.s32.totalorder %s18, 1
      %p83 = scmp.ne.s32.totalorder %s78, %s80
      %p84 = scmp.eq.s32.totalorder %s18, 0
      %p85 = por %p83, %p84
      %p86 = scmp.ne.s32.totalorder %s78, %s80
      %p87 = scmp.eq.s32.totalorder %s23, 1
      %p88 = por %p86, %p87
      %p89 = scmp.ne.s32.totalorder %s80, %s81
      %p90 = scmp.eq.s32.totalorder %s23, 0
      %p91 = por %p89, %p90
      %p92 = scmp.ne.s32.totalorder %s80, %s81
      %p93 = scmp.eq.s32.totalorder %s24, 1
      %p94 = por %p92, %p93
      %p96 = scmp.ne.s32.totalorder %s81, %s95
      %p97 = scmp.eq.s32.totalorder %s24, 0
      %p98 = por %p96, %p97
      %s100 = sadd.s32 %s99, 1
      %p103 = scmp.eq.s32.totalorder %s18, 1
      %p104 = scmp.ne.s32.totalorder %s99, %s101
      %p105 = scmp.eq.s32.totalorder %s18, 0
      %p106 = por %p104, %p105
      %p107 = scmp.ne.s32.totalorder %s99, %s101
      %p108 = scmp.eq.s32.totalorder %s23, 1
      %p109 = por %p107, %p108
      %p110 = scmp.ne.s32.totalorder %s101, %s102
      %p111 = scmp.eq.s32.totalorder %s23, 0
      %p112 = por %p110, %p111
      %p113 = scmp.ne.s32.totalorder %s101, %s102
      %p114 = scmp.eq.s32.totalorder %s24, 1
      %p115 = por %p113, %p114
      %p117 = scmp.ne.s32.totalorder %s102, %s116
      %p118 = scmp.eq.s32.totalorder %s24, 0
      %p119 = por %p117, %p118
      %s121 = sadd.s32 %s120, 1
      %p124 = scmp.eq.s32.totalorder %s18, 1
      %p125 = scmp.ne.s32.totalorder %s120, %s122
      %p126 = scmp.eq.s32.totalorder %s18, 0
      %p127 = por %p125, %p126
      %p128 = scmp.ne.s32.totalorder %s120, %s122
      %p129 = scmp.eq.s32.totalorder %s23, 1
      %p130 = por %p128, %p129
      %p131 = scmp.ne.s32.totalorder %s122, %s123
      %p132 = scmp.eq.s32.totalorder %s23, 0
      %p133 = por %p131, %p132
      %p134 = scmp.ne.s32.totalorder %s122, %s123
      %p135 = scmp.eq.s32.totalorder %s24, 1
      %p136 = por %p134, %p135
      %p138 = scmp.ne.s32.totalorder %s123, %s137
      %p139 = scmp.eq.s32.totalorder %s24, 0
      %p140 = por %p138, %p139
      %s142 = sadd.s32 %s141, 1
      %p145 = scmp.eq.s32.totalorder %s18, 1
      %p146 = scmp.ne.s32.totalorder %s141, %s143
      %p147 = scmp.eq.s32.totalorder %s18, 0
      %p148 = por %p146, %p147
      %p149 = scmp.ne.s32.totalorder %s141, %s143
      %p150 = scmp.eq.s32.totalorder %s23, 1
      %p151 = por %p149, %p150
      %p152 = scmp.ne.s32.totalorder %s143, %s144
      %p153 = scmp.eq.s32.totalorder %s23, 0
      %p154 = por %p152, %p153
      %p155 = scmp.ne.s32.totalorder %s143, %s144
      %p156 = scmp.eq.s32.totalorder %s24, 1
      %p157 = por %p155, %p156
      %p159 = scmp.ne.s32.totalorder %s144, %s158
      %p160 = scmp.eq.s32.totalorder %s24, 0
      %p161 = por %p159, %p160
      %s163 = sadd.s32 %s162, 1
      %p166 = scmp.eq.s32.totalorder %s18, 1
      %p167 = scmp.ne.s32.totalorder %s162, %s164
      %p168 = scmp.eq.s32.totalorder %s18, 0
      %p169 = por %p167, %p168
      %p170 = scmp.ne.s32.totalorder %s162, %s164
      %p171 = scmp.eq.s32.totalorder %s23, 1
      %p172 = por %p170, %p171
      %p173 = scmp.ne.s32.totalorder %s164, %s165
      %p174 = scmp.eq.s32.totalorder %s23, 0
      %p175 = por %p173, %p174
      %p176 = scmp.ne.s32.totalorder %s164, %s165
      %p177 = scmp.eq.s32.totalorder %s24, 1
      %p178 = por %p176, %p177
      %p180 = scmp.ne.s32.totalorder %s165, %s179
      %p181 = scmp.eq.s32.totalorder %s24, 0
      %p182 = por %p180, %p181
      %s183 = ssub.s32 %s18, %s25
      %p184 = scmp.eq.s32.totalorder %s183, 0
      %s186 = sadd.s32 %s185, 1
      %s187 = scalar_select %p184, %s185, %s186
      %p190 = pneg %p184
      %p191 = scmp.eq.s32.totalorder %s18, 1
      %p192 = por %p190, %p191
      %p193 = scmp.ne.s32.totalorder %s185, %s188
      %p194 = scmp.eq.s32.totalorder %s18, 0
      %p195 = por %p193, %p194
      %p196 = scmp.ne.s32.totalorder %s185, %s188
      %p197 = scmp.eq.s32.totalorder %s23, 1
      %p198 = por %p196, %p197
      %p199 = scmp.ne.s32.totalorder %s188, %s189
      %p200 = scmp.eq.s32.totalorder %s23, 0
      %p201 = por %p199, %p200
      %p202 = scmp.ne.s32.totalorder %s188, %s189
      %p203 = scmp.eq.s32.totalorder %s24, 1
      %p204 = por %p202, %p203
      %p206 = scmp.ne.s32.totalorder %s189, %s205
      %p207 = scmp.eq.s32.totalorder %s24, 0
      %p208 = por %p206, %p207
      %s209 = ssub.s32 %s18, %s25
      %p210 = scmp.eq.s32.totalorder %s209, 0
      %s212 = sadd.s32 %s211, 1
      %s213 = scalar_select %p210, %s211, %s212
      %p216 = pneg %p210
      %p217 = scmp.eq.s32.totalorder %s18, 1
      %p218 = por %p216, %p217
      %p219 = scmp.ne.s32.totalorder %s211, %s214
      %p220 = scmp.eq.s32.totalorder %s18, 0
      %p221 = por %p219, %p220
      %p222 = scmp.ne.s32.totalorder %s211, %s214
      %p223 = scmp.eq.s32.totalorder %s23, 1
      %p224 = por %p222, %p223
      %p225 = scmp.ne.s32.totalorder %s214, %s215
      %p226 = scmp.eq.s32.totalorder %s23, 0
      %p227 = por %p225, %p226
      %p228 = scmp.ne.s32.totalorder %s214, %s215
      %p229 = scmp.eq.s32.totalorder %s24, 1
      %p230 = por %p228, %p229
      %p232 = scmp.ne.s32.totalorder %s215, %s231
      %p233 = scmp.eq.s32.totalorder %s24, 0
      %p234 = por %p232, %p233
      %p235 = scmp.le.s32.totalorder 1, %s18
      %p236 = scmp.lt.s32.totalorder %s18, 3
      %p237 = pnand %p235, %p236
      %p238 = pneg %p237
      // Predicated region
      $region9: #{tpu_custom_call.1} parent=5 // pred_check
        _
      $region10: #{tpu_custom_call.1} parent=5 // pred_check_branch
        %240 = sbr.rel (%p237) target = $region12
      $region11: #{tpu_custom_call.1} parent=5 // pred_region
        %s241 = ssub.s32 %s18, 1
        // Predicated region
        $region13: #{tpu_custom_call.1} parent=11 // pred_check
          %p242 = pneg %p91
        $region14: #{tpu_custom_call.1} parent=11 // pred_check_branch
          %244 = sbr.rel (%p242) target = $region16
        $region15: #{tpu_custom_call.1} parent=11 // pred_region
          _
        $region16: #{tpu_custom_call.1} parent=11 // pred_fallthru
          _
        // Predicated region
        $region17: #{tpu_custom_call.1} parent=11 // pred_check
          %p245 = pneg %p112
        $region18: #{tpu_custom_call.1} parent=11 // pred_check_branch
          %247 = sbr.rel (%p245) target = $region20
        $region19: #{tpu_custom_call.1} parent=11 // pred_region
          _
        $region20: #{tpu_custom_call.1} parent=11 // pred_fallthru
          _
        // Predicated region
        $region21: #{tpu_custom_call.1} parent=11 // pred_check
          %p248 = pneg %p133
        $region22: #{tpu_custom_call.1} parent=11 // pred_check_branch
          %250 = sbr.rel (%p248) target = $region24
        $region23: #{tpu_custom_call.1} parent=11 // pred_region
          _
        $region24: #{tpu_custom_call.1} parent=11 // pred_fallthru
          _
        // Predicated region
        $region25: #{tpu_custom_call.1} parent=11 // pred_check
          %p251 = pneg %p154
        $region26: #{tpu_custom_call.1} parent=11 // pred_check_branch
          %253 = sbr.rel (%p251) target = $region28
        $region27: #{tpu_custom_call.1} parent=11 // pred_region
          _
        $region28: #{tpu_custom_call.1} parent=11 // pred_fallthru
          _
        // Predicated region
        $region29: #{tpu_custom_call.1} parent=11 // pred_check
          %p254 = pneg %p175
        $region30: #{tpu_custom_call.1} parent=11 // pred_check_branch
          %256 = sbr.rel (%p254) target = $region32
        $region31: #{tpu_custom_call.1} parent=11 // pred_region
          _
        $region32: #{tpu_custom_call.1} parent=11 // pred_fallthru
          _
      $region12: #{tpu_custom_call.1} parent=5 // pred_fallthru
        _
      %p257 = scmp.lt.s32.totalorder %s18, 2
      // Predicated region
      $region33: #{tpu_custom_call.1} parent=5 // pred_check
        %p258 = pneg %p257
      $region34: #{tpu_custom_call.1} parent=5 // pred_check_branch
        %260 = sbr.rel (%p258) target = $region36
      $region35: #{tpu_custom_call.1} parent=5 // pred_region
        // Predicated region
        $region37: #{tpu_custom_call.1} parent=35 // pred_check
          %p261 = pneg %p38
        $region38: #{tpu_custom_call.1} parent=35 // pred_check_branch
          %263 = sbr.rel (%p261) target = $region40
        $region39: #{tpu_custom_call.1} parent=35 // pred_region
          %p264 = scmp.lt.s32.totalorder %s18, 1
          %s265 = scalar_select %p264, %s18, 1
          %s266 = smul.addr %s265, 8
          %s267 = scalar_lea.vmem %s0, %s266
        $region40: #{tpu_custom_call.1} parent=35 // pred_fallthru
          _
        // Predicated region
        $region41: #{tpu_custom_call.1} parent=35 // pred_check
          %p268 = pneg %p64
        $region42: #{tpu_custom_call.1} parent=35 // pred_check_branch
          %270 = sbr.rel (%p268) target = $region44
        $region43: #{tpu_custom_call.1} parent=35 // pred_region
          %p271 = scmp.lt.s32.totalorder %s18, 1
          %s272 = scalar_select %p271, %s18, 1
          %s273 = smul.addr %s272, 2
          %s274 = smul.addr %s273, 8
          %s275 = scalar_lea.vmem %s1, %s274
        $region44: #{tpu_custom_call.1} parent=35 // pred_fallthru
          _
      $region36: #{tpu_custom_call.1} parent=5 // pred_fallthru
        _
      %p276 = scmp.le.s32.totalorder 1, %s18
      %p277 = scmp.lt.s32.totalorder %s18, 3
      %p278 = pnand %p276, %p277
      %p279 = pneg %p278
      // Predicated region
      $region45: #{tpu_custom_call.1} parent=5 // pred_check
        _
      $region46: #{tpu_custom_call.1} parent=5 // pred_check_branch
        %281 = sbr.rel (%p278) target = $region48
      $region47: #{tpu_custom_call.1} parent=5 // pred_region
        %s282 = ssub.s32 %s18, 1
        %p283 = scmp.lt.s32.totalorder %s23, 1
        %s284 = scalar_select %p283, %s23, 1
        %s285 = smul.addr %s284, 8
        %s286 = scalar_lea.vmem %s0, %s285
        %p287 = pneg %p44
        %p288 = pneg %p41
        %p289 = scmp.lt.s32.totalorder %s23, 1
        %s290 = scalar_select %p289, %s23, 1
        %s291 = smul.addr %s290, 2
        %s292 = smul.addr %s291, 8
        %s293 = scalar_lea.vmem %s1, %s292
        %p294 = pneg %p70
        %p295 = pneg %p67
        %p296 = pneg %p91
        %p297 = pneg %p88
        %p298 = pneg %p112
        %p299 = pneg %p109
        %p300 = pneg %p133
        %p301 = pneg %p130
        %p302 = pneg %p154
        %p303 = pneg %p151
        %p304 = pneg %p175
        %p305 = pneg %p172
        %p306 = pneg %p201
        %p307 = pneg %p198
        %s308 = sand.u32 %s188, 1
        %s309 = scalar_lea.sflag [#allocation3], %s308
        %s310 = sand.u32 %s188, 1
        %s311 = smul.addr %s310, 8
        %s312 = scalar_lea.vmem [#allocation2], %s311
        %p313 = pneg %p227
        %p314 = pneg %p224
        %p315 = scmp.lt.s32.totalorder %s23, 1
        %s316 = scalar_select %p315, %s23, 1
        %s317 = smul.addr %s316, 2
        %s318 = smul.addr %s317, 8
        %s319 = scalar_lea.vmem %s8, %s318
        %p320 = scmp.lt.s32.totalorder %s23, 1
        %s321 = scalar_select %p320, %s23, 1
        %s322 = smul.addr %s321, 8
        %s323 = scalar_lea.vmem %s0, %s322
        %p324 = scmp.lt.s32.totalorder %s23, 1
        %s325 = scalar_select %p324, %s23, 1
        %s326 = smul.addr %s325, 2
        %s327 = smul.addr %s326, 8
        %s328 = scalar_lea.vmem %s1, %s327
        %p329 = scmp.lt.s32.totalorder %s23, 1
        %s330 = scalar_select %p329, %s23, 1
        %s331 = smul.addr %s330, 2
        %s332 = smul.addr %s331, 8
        %s333 = scalar_lea.vmem %s8, %s332
        %v334 = vld [vmem:[%s323] sm:$0xff]
        %v335 = vld [vmem:[%s2] sm:$0xff]
        %v336 = vld [vmem:[%s2 + $0x8] sm:$0xff]
        %v337 = vld [vmem:[%s2 + $0x10] sm:$0xff]
        %v338 = vld [vmem:[%s2 + $0x18] sm:$0xff]
        %v339 = vld [vmem:[%s3] sm:$0xff]
        %v340 = vld [vmem:[%s3 + $0x8] sm:$0xff]
        %v341 = vld [vmem:[%s3 + $0x10] sm:$0xff]
        %v342 = vld [vmem:[%s3 + $0x18] sm:$0xff]
        %344 = vrot.lane.b32.xlu0 %v334, 126
        %v345 = vpop.permute.xlu0 %344
        %vm347 = vcmask 64512
        %v349 = vsel %vm347, %v339, 0
        %v352 = vsel %vm347, %v340, 0
        %v355 = vsel %vm347, %v341, 0
        %v358 = vsel %vm347, %v342, 0
        %360 = vmatprep.subr.mxu0 0.0
        %361 = vmatpush1.msra.mxu0 %v345
        %362 = vmatprep.subr.mxu0 0.0
        %363 = vmatpush1.msra.mxu0 0.0
        %364 = vmatprep.subr.mxu0 0.0
        %365 = vmatpush1.msra.mxu0 0.0
        %366 = vmatprep.subr.mxu0 0.0
        %367 = vmatpush1.msra.mxu0 0.0
        %368 = vmatprep.subr.mxu0 0.0
        %369 = vmatpush1.msra.mxu0 0.0
        %370 = vmatprep.subr.mxu0 0.0
        %371 = vmatpush1.msra.mxu0 0.0
        %372 = vmatprep.subr.mxu0 0.0
        %373 = vmatpush1.msra.mxu0 0.0
        %374 = vmatprep.subr.mxu0 0.0
        %375 = vmatpush1.msra.mxu0 0.0
        %376 = vmatprep.subr.mxu0 0.0
        %377 = vmatpush1.msra.mxu0 0.0
        %378 = vmatprep.subr.mxu0 0.0
        %379 = vmatpush1.msra.mxu0 0.0
        %380 = vmatprep.subr.mxu0 0.0
        %381 = vmatpush1.msra.mxu0 0.0
        %382 = vmatprep.subr.mxu0 0.0
        %383 = vmatpush1.msra.mxu0 0.0
        %384 = vmatprep.subr.mxu0 0.0
        %385 = vmatpush1.msra.mxu0 0.0
        %386 = vmatprep.subr.mxu0 0.0
        %387 = vmatpush1.msra.mxu0 0.0
        %388 = vmatprep.subr.mxu0 0.0
        %389 = vmatpush1.msra.mxu0 0.0
        %390 = vmatprep.subr.mxu0 0.0
        %391 = vmatpush1.msra.mxu0 0.0
        %392 = vmatprep.subr.mxu0 0.0
        %393 = vmatpush1.msra.mxu0 0.0
        %394 = vmatprep.subr.mxu0 0.0
        %395 = vmatpush1.msra.mxu0 0.0
        %396 = vmatprep.subr.mxu0 0.0
        %397 = vmatpush1.msra.mxu0 0.0
        %398 = vmatprep.subr.mxu0 0.0
        %399 = vmatpush1.msra.mxu0 0.0
        %400 = vmatprep.subr.mxu0 0.0
        %401 = vmatpush1.msra.mxu0 0.0
        %402 = vmatprep.subr.mxu0 0.0
        %403 = vmatpush1.msra.mxu0 0.0
        %404 = vmatprep.subr.mxu0 0.0
        %405 = vmatpush1.msra.mxu0 0.0
        %406 = vmatprep.subr.mxu0 0.0
        %407 = vmatpush1.msra.mxu0 0.0
        %408 = vmatprep.subr.mxu0 0.0
        %409 = vmatpush1.msra.mxu0 0.0
        %410 = vmatprep.subr.mxu0 0.0
        %411 = vmatpush1.msra.mxu0 0.0
        %412 = vmatprep.subr.mxu0 0.0
        %413 = vmatpush1.msra.mxu0 0.0
        %414 = vmatprep.subr.mxu0 0.0
        %415 = vmatpush1.msra.mxu0 0.0
        %416 = vmatprep.subr.mxu0 0.0
        %417 = vmatpush1.msra.mxu0 0.0
        %418 = vmatprep.subr.mxu0 0.0
        %419 = vmatpush1.msra.mxu0 0.0
        %420 = vmatprep.subr.mxu0 0.0
        %421 = vmatpush1.msra.mxu0 0.0
        %422 = vmatprep.subr.mxu0 0.0
        %423 = vmatpush1.msra.mxu0 0.0
        %424 = vmatprep.mubr.f32.mxu0 0.0
        %425 = vmatmul.mubr.f32.gmra.mrb[0].mxu0 %v349
        %v426 = vpop.f32.mrb[0].mxu0
        %v427 = vadd.f32 0.0, %v426
        %v428 = vpop.f32.mrb[0].mxu0
        %429 = vmatprep.mubr.f32.mxu0 0.0
        %430 = vmatmul.mubr.f32.gmra.mrb[0].mxu0 %v352
        %v431 = vpop.f32.mrb[0].mxu0
        %v432 = vadd.f32 0.0, %v431
        %v433 = vpop.f32.mrb[0].mxu0
        %434 = vmatprep.mubr.f32.mxu0 0.0
        %435 = vmatmul.mubr.f32.gmra.mrb[0].mxu0 %v355
        %v436 = vpop.f32.mrb[0].mxu0
        %v437 = vadd.f32 0.0, %v436
        %v438 = vpop.f32.mrb[0].mxu0
        %439 = vmatprep.mubr.f32.mxu0 0.0
        %440 = vmatmul.mubr.f32.gmra.mrb[0].mxu0 %v358
        %v441 = vpop.f32.mrb[0].mxu0
        %v442 = vadd.f32 0.0, %v441
        %v443 = vpop.f32.mrb[0].mxu0
        %444 = vdwg.mxu0
        %v446 = vsel %vm347, %v335, 0
        %v449 = vsel %vm347, %v336, 0
        %v452 = vsel %vm347, %v337, 0
        %v455 = vsel %vm347, %v338, 0
        %457 = vmatprep.subr.mxu0 0.0
        %458 = vmatpush1.msra.mxu0 %v334
        %459 = vmatprep.subr.mxu0 0.0
        %460 = vmatpush1.msra.mxu0 0.0
        %461 = vmatprep.subr.mxu0 0.0
        %462 = vmatpush1.msra.mxu0 0.0
        %463 = vmatprep.subr.mxu0 0.0
        %464 = vmatpush1.msra.mxu0 0.0
        %465 = vmatprep.subr.mxu0 0.0
        %466 = vmatpush1.msra.mxu0 0.0
        %467 = vmatprep.subr.mxu0 0.0
        %468 = vmatpush1.msra.mxu0 0.0
        %469 = vmatprep.subr.mxu0 0.0
        %470 = vmatpush1.msra.mxu0 0.0
        %471 = vmatprep.subr.mxu0 0.0
        %472 = vmatpush1.msra.mxu0 0.0
        %473 = vmatprep.subr.mxu0 0.0
        %474 = vmatpush1.msra.mxu0 0.0
        %475 = vmatprep.subr.mxu0 0.0
        %476 = vmatpush1.msra.mxu0 0.0
        %477 = vmatprep.subr.mxu0 0.0
        %478 = vmatpush1.msra.mxu0 0.0
        %479 = vmatprep.subr.mxu0 0.0
        %480 = vmatpush1.msra.mxu0 0.0
        %481 = vmatprep.subr.mxu0 0.0
        %482 = vmatpush1.msra.mxu0 0.0
        %483 = vmatprep.subr.mxu0 0.0
        %484 = vmatpush1.msra.mxu0 0.0
        %485 = vmatprep.subr.mxu0 0.0
        %486 = vmatpush1.msra.mxu0 0.0
        %487 = vmatprep.subr.mxu0 0.0
        %488 = vmatpush1.msra.mxu0 0.0
        %489 = vmatprep.subr.mxu0 0.0
        %490 = vmatpush1.msra.mxu0 0.0
        %491 = vmatprep.subr.mxu0 0.0
        %492 = vmatpush1.msra.mxu0 0.0
        %493 = vmatprep.subr.mxu0 0.0
        %494 = vmatpush1.msra.mxu0 0.0
        %495 = vmatprep.subr.mxu0 0.0
        %496 = vmatpush1.msra.mxu0 0.0
        %497 = vmatprep.subr.mxu0 0.0
        %498 = vmatpush1.msra.mxu0 0.0
        %499 = vmatprep.subr.mxu0 0.0
        %500 = vmatpush1.msra.mxu0 0.0
        %501 = vmatprep.subr.mxu0 0.0
        %502 = vmatpush1.msra.mxu0 0.0
        %503 = vmatprep.subr.mxu0 0.0
        %504 = vmatpush1.msra.mxu0 0.0
        %505 = vmatprep.subr.mxu0 0.0
        %506 = vmatpush1.msra.mxu0 0.0
        %507 = vmatprep.subr.mxu0 0.0
        %508 = vmatpush1.msra.mxu0 0.0
        %509 = vmatprep.subr.mxu0 0.0
        %510 = vmatpush1.msra.mxu0 0.0
        %511 = vmatprep.subr.mxu0 0.0
        %512 = vmatpush1.msra.mxu0 0.0
        %513 = vmatprep.subr.mxu0 0.0
        %514 = vmatpush1.msra.mxu0 0.0
        %515 = vmatprep.subr.mxu0 0.0
        %516 = vmatpush1.msra.mxu0 0.0
        %517 = vmatprep.subr.mxu0 0.0
        %518 = vmatpush1.msra.mxu0 0.0
        %519 = vmatprep.subr.mxu0 0.0
        %520 = vmatpush1.msra.mxu0 0.0
        %521 = vmatprep.mubr.f32.mxu0 0.0
        %522 = vmatmul.mubr.f32.gmra.mrb[0].mxu0 %v446
        %v523 = vpop.f32.mrb[0].mxu0
        %v524 = vadd.f32 %v427, %v523
        %v525 = vpop.f32.mrb[0].mxu0
        %526 = vmatprep.mubr.f32.mxu0 0.0
        %527 = vmatmul.mubr.f32.gmra.mrb[0].mxu0 %v449
        %v528 = vpop.f32.mrb[0].mxu0
        %v529 = vadd.f32 %v432, %v528
        %v530 = vpop.f32.mrb[0].mxu0
        %531 = vmatprep.mubr.f32.mxu0 0.0
        %532 = vmatmul.mubr.f32.gmra.mrb[0].mxu0 %v452
        %v533 = vpop.f32.mrb[0].mxu0
        %v534 = vadd.f32 %v437, %v533
        %v535 = vpop.f32.mrb[0].mxu0
        %536 = vmatprep.mubr.f32.mxu0 0.0
        %537 = vmatmul.mubr.f32.gmra.mrb[0].mxu0 %v455
        %v538 = vpop.f32.mrb[0].mxu0
        %v539 = vadd.f32 %v442, %v538
        %v540 = vpop.f32.mrb[0].mxu0
        %541 = vdwg.mxu0
        %v542 = vld [vmem:[%s4] sm:$0xff]
        %v543 = vld [vmem:[%s4 + $0x8] sm:$0xff]
        %v544 = vld [vmem:[%s4 + $0x10] sm:$0xff]
        %v545 = vld [vmem:[%s4 + $0x18] sm:$0xff]
        %547 = vset.pattern.permute.xlu0 0
        %548 = vperm.xlu0 %547, %v542
        %v549 = vpop.permute.xlu0 %548
        %552 = vset.pattern.permute.xlu0 0
        %553 = vperm.xlu0 %552, %v543
        %v554 = vpop.permute.xlu0 %553
        %557 = vset.pattern.permute.xlu0 0
        %558 = vperm.xlu0 %557, %v544
        %v559 = vpop.permute.xlu0 %558
        %562 = vset.pattern.permute.xlu0 0
        %563 = vperm.xlu0 %562, %v545
        %v564 = vpop.permute.xlu0 %563
        %v566 = vadd.f32 %v524, %v549
        %v567 = vadd.f32 %v529, %v554
        %v568 = vadd.f32 %v534, %v559
        %v569 = vadd.f32 %v539, %v564
        %v570 = vtanh.pop %v566
        %v571 = vtanh.pop %v567
        %v572 = vxor.u32 %v568, 2147483648
        %v573 = vxor.u32 %v569, 2147483648
        %v574 = vmul.f32 %v572, 1.442695
        %v575 = vpow.pop %v574
        %v576 = vmul.f32 %v573, 1.442695
        %v577 = vpow.pop %v576
        %v578 = vadd.f32 %v575, 1.0
        %v579 = vadd.f32 %v577, 1.0
        %v580 = vrcp.pop %v578
        %v581 = vmul.f32 1.0, %v580
        %v582 = vrcp.pop %v579
        %v583 = vmul.f32 1.0, %v582
        %v584 = vmul.f32 %v570, %v581
        %v585 = vmul.f32 %v571, %v583
        %v586 = vld [vmem:[%s5] sm:$0xff]
        %v587 = vld [vmem:[%s5 + $0x8] sm:$0xff]
        %v588 = vld [vmem:[%s5 + $0x10] sm:$0xff]
        %v589 = vld [vmem:[%s6] sm:$0xff]
        %v590 = vld [vmem:[%s6 + $0x8] sm:$0xff]
        %v591 = vld [vmem:[%s6 + $0x10] sm:$0xff]
        %593 = vset.pattern.permute.xlu0 0
        %594 = vperm.xlu0 %593, %v589
        %v595 = vpop.permute.xlu0 %594
        %598 = vset.pattern.permute.xlu0 0
        %599 = vperm.xlu0 %598, %v590
        %v600 = vpop.permute.xlu0 %599
        %603 = vset.pattern.permute.xlu0 0
        %604 = vperm.xlu0 %603, %v591
        %v605 = vpop.permute.xlu0 %604
        %vm607 = vcmask 130048
        %v609 = vsel %vm607, %v586, 0
        %v612 = vsel %vm607, %v587, 0
        %v615 = vsel %vm607, %v588, 0
        %617 = vmatprep.subr.mxu0 0.0
        %618 = vmatpush1.msra.mxu0 %v584
        %619 = vmatprep.subr.mxu0 0.0
        %620 = vmatpush1.msra.mxu0 %v585
        %621 = vmatprep.subr.mxu0 0.0
        %622 = vmatpush1.msra.mxu0 0.0
        %623 = vmatprep.subr.mxu0 0.0
        %624 = vmatpush1.msra.mxu0 0.0
        %625 = vmatprep.subr.mxu0 0.0
        %626 = vmatpush1.msra.mxu0 0.0
        %627 = vmatprep.subr.mxu0 0.0
        %628 = vmatpush1.msra.mxu0 0.0
        %629 = vmatprep.subr.mxu0 0.0
        %630 = vmatpush1.msra.mxu0 0.0
        %631 = vmatprep.subr.mxu0 0.0
        %632 = vmatpush1.msra.mxu0 0.0
        %633 = vmatprep.subr.mxu0 0.0
        %634 = vmatpush1.msra.mxu0 0.0
        %635 = vmatprep.subr.mxu0 0.0
        %636 = vmatpush1.msra.mxu0 0.0
        %637 = vmatprep.subr.mxu0 0.0
        %638 = vmatpush1.msra.mxu0 0.0
        %639 = vmatprep.subr.mxu0 0.0
        %640 = vmatpush1.msra.mxu0 0.0
        %641 = vmatprep.subr.mxu0 0.0
        %642 = vmatpush1.msra.mxu0 0.0
        %643 = vmatprep.subr.mxu0 0.0
        %644 = vmatpush1.msra.mxu0 0.0
        %645 = vmatprep.subr.mxu0 0.0
        %646 = vmatpush1.msra.mxu0 0.0
        %647 = vmatprep.subr.mxu0 0.0
        %648 = vmatpush1.msra.mxu0 0.0
        %649 = vmatprep.subr.mxu0 0.0
        %650 = vmatpush1.msra.mxu0 0.0
        %651 = vmatprep.subr.mxu0 0.0
        %652 = vmatpush1.msra.mxu0 0.0
        %653 = vmatprep.subr.mxu0 0.0
        %654 = vmatpush1.msra.mxu0 0.0
        %655 = vmatprep.subr.mxu0 0.0
        %656 = vmatpush1.msra.mxu0 0.0
        %657 = vmatprep.subr.mxu0 0.0
        %658 = vmatpush1.msra.mxu0 0.0
        %659 = vmatprep.subr.mxu0 0.0
        %660 = vmatpush1.msra.mxu0 0.0
        %661 = vmatprep.subr.mxu0 0.0
        %662 = vmatpush1.msra.mxu0 0.0
        %663 = vmatprep.subr.mxu0 0.0
        %664 = vmatpush1.msra.mxu0 0.0
        %665 = vmatprep.subr.mxu0 0.0
        %666 = vmatpush1.msra.mxu0 0.0
        %667 = vmatprep.subr.mxu0 0.0
        %668 = vmatpush1.msra.mxu0 0.0
        %669 = vmatprep.subr.mxu0 0.0
        %670 = vmatpush1.msra.mxu0 0.0
        %671 = vmatprep.subr.mxu0 0.0
        %672 = vmatpush1.msra.mxu0 0.0
        %673 = vmatprep.subr.mxu0 0.0
        %674 = vmatpush1.msra.mxu0 0.0
        %675 = vmatprep.subr.mxu0 0.0
        %676 = vmatpush1.msra.mxu0 0.0
        %677 = vmatprep.subr.mxu0 0.0
        %678 = vmatpush1.msra.mxu0 0.0
        %679 = vmatprep.subr.mxu0 0.0
        %680 = vmatpush1.msra.mxu0 0.0
        %681 = vmatprep.mubr.f32.mxu0 0.0
        %682 = vmatmul.mubr.f32.gmra.mrb[0].mxu0 %v609
        %v683 = vpop.f32.mrb[0].mxu0
        %v684 = vadd.f32 %v595, %v683
        %v685 = vpop.f32.mrb[0].mxu0
        %686 = vmatprep.mubr.f32.mxu0 0.0
        %687 = vmatmul.mubr.f32.gmra.mrb[0].mxu0 %v612
        %v688 = vpop.f32.mrb[0].mxu0
        %v689 = vadd.f32 %v600, %v688
        %v690 = vpop.f32.mrb[0].mxu0
        %691 = vmatprep.mubr.f32.mxu0 0.0
        %692 = vmatmul.mubr.f32.gmra.mrb[0].mxu0 %v615
        %v693 = vpop.f32.mrb[0].mxu0
        %v694 = vadd.f32 %v605, %v693
        %v695 = vpop.f32.mrb[0].mxu0
        %696 = vdwg.mxu0
        %v697 = vadd.f32 %v694, %v345
        %vm698 = vcmask 113664
        %699 = vst.msk [vmem:[%s312] sm:$0xff] %vm698, %v697
        %v700 = vld [vmem:[%s328] sm:$0xff]
        %v701 = vld [vmem:[%s328 + $0x8] sm:$0xff]
        %704 = vrot.lane.b32.xlu0 %v700, 126
        %v705 = vpop.permute.xlu0 %704
        %706 = vrot.lane.b32.xlu0 %v701, 126
        %v707 = vpop.permute.xlu0 %706
        %v710 = vadd.f32 %v684, %v705
        %v711 = vadd.f32 %v689, %v707
        %712 = vst.msk [vmem:[%s333] sm:$0xff] %vm698, %v710
        %713 = vst.msk [vmem:[%s333 + $0x8] sm:$0xff] %vm698, %v711
        %s714 = sand.u32 %s188, 1
        %s715 = scalar_lea.sflag [#allocation3], %s714
        %s716 = sand.u32 %s188, 1
        %s717 = smul.addr %s716, 8
        %s718 = scalar_lea.vmem [#allocation2], %s717
        %p719 = scmp.lt.s32.totalorder %s23, 1
        %s720 = scalar_select %p719, %s23, 1
        %s721 = smul.addr %s720, 2
        %s722 = smul.addr %s721, 8
        %s723 = scalar_lea.vmem %s8, %s722
        // Predicated region
        $region49: #{tpu_custom_call.1} parent=47 // pred_check
          %p724 = pneg %p198
        $region50: #{tpu_custom_call.1} parent=47 // pred_check_branch
          %726 = sbr.rel (%p724) target = $region52
        $region51: #{tpu_custom_call.1} parent=47 // pred_region
          %s728 = ssub.s32 128, 128
          %729 = vsyncadd %s715, %s728
          %s730 = smul.addr %s23, 128
          %s731 = scalar_lea.hbm %s7, %s730
          %s733 = sshll.u32 %s718, 4
          %s734 = int_to_ptr.vmem [resolvable:$true] %s733
          %736 = dma.vmem_to_hbm [thread:$0]  %s734, 128, %s731, %s715
        $region52: #{tpu_custom_call.1} parent=47 // pred_fallthru
          _
        // Predicated region
        $region53: #{tpu_custom_call.1} parent=47 // pred_check
          %p737 = pneg %p224
        $region54: #{tpu_custom_call.1} parent=47 // pred_check_branch
          %739 = sbr.rel (%p737) target = $region56
        $region55: #{tpu_custom_call.1} parent=47 // pred_region
          _
        $region56: #{tpu_custom_call.1} parent=47 // pred_fallthru
          _
      $region48: #{tpu_custom_call.1} parent=5 // pred_fallthru
        _
      %p740 = scmp.le.s32.totalorder 2, %s18
      // Predicated region
      $region57: #{tpu_custom_call.1} parent=5 // pred_check
        %p741 = pneg %p740
      $region58: #{tpu_custom_call.1} parent=5 // pred_check_branch
        %743 = sbr.rel (%p741) target = $region60
      $region59: #{tpu_custom_call.1} parent=5 // pred_region
        %s744 = ssub.s32 %s18, 2
        // Predicated region
        $region61: #{tpu_custom_call.1} parent=59 // pred_check
          %p745 = pneg %p204
        $region62: #{tpu_custom_call.1} parent=59 // pred_check_branch
          %747 = sbr.rel (%p745) target = $region64
        $region63: #{tpu_custom_call.1} parent=59 // pred_region
          %s748 = sand.u32 %s189, 1
          %s749 = scalar_lea.sflag [#allocation3], %s748
          %s750 = sand.u32 %s189, 1
          %s751 = smul.addr %s750, 8
          %s752 = scalar_lea.vmem [#allocation2], %s751
          %753 = dma.done %s749, 128
        $region64: #{tpu_custom_call.1} parent=59 // pred_fallthru
          _
        // Predicated region
        $region65: #{tpu_custom_call.1} parent=59 // pred_check
          %p754 = pneg %p230
        $region66: #{tpu_custom_call.1} parent=59 // pred_check_branch
          %756 = sbr.rel (%p754) target = $region68
        $region67: #{tpu_custom_call.1} parent=59 // pred_region
          %p757 = scmp.lt.s32.totalorder %s24, 1
          %s758 = scalar_select %p757, %s24, 1
          %s759 = smul.addr %s758, 2
          %s760 = smul.addr %s759, 8
          %s761 = scalar_lea.vmem %s8, %s760
        $region68: #{tpu_custom_call.1} parent=59 // pred_fallthru
          _
      $region60: #{tpu_custom_call.1} parent=5 // pred_fallthru
        _
    $region6: #{tpu_custom_call.1} parent=1 // loop_footer
      %s22 = sadd.s32 1, %s18
    $region7: #{tpu_custom_call.1} parent=1 // loop_footer_branch
      %17 = sbr.rel target = $region3
    $region8: #{tpu_custom_call.1} parent=1 // loop_exit
      _
    %762 = vsyncpa [#allocation3], 1
    %s763 = scalar_lea.sflag [#allocation3], 1
    %764 = vsyncpa %s763, 1

</llo_original>
